<compile_context>
chip_gen: v6e
topology: v6e:2x2x1
jax: 0.10.0
libtpu: 0.0.40
codegen_flags: <defaults>
</compile_context>

<pallas_src>
import math

import jax
import jax.numpy as jnp
from jax.experimental import pallas as pl
from jax.experimental.pallas import tpu as pltpu


def _copy_kernel(x_ref, o_ref):
    # f = identity: copy the tile through VMEM.
    o_ref[...] = x_ref[...]


def _sublane_quantum(dtype) -> int:
    # 4-byte -> 8 rows, 2-byte -> 16 rows, 1-byte -> 32 rows (sublane packing).
    itemsize = jnp.dtype(dtype).itemsize
    return max(8, 32 // max(itemsize, 1))


_TARGET_BLOCK_BYTES = 2 * 1024 * 1024   # ~2 MiB per block (amortizes ~0.35 us/step)
_VMEM_LIMIT_BYTES = 32 * 1024 * 1024    # explicit budget; 4x2 MiB double-buffered fits
                                        # comfortably on v5e/v6e/v7x


def _choose_2d_view(x):
    """Lane-dense (rows, cols) factorization of x with no padding and no copies."""
    n = x.size
    # Prefer a wide, 128-multiple trailing dim that divides n exactly.
    for cols in (8192, 4096, 2048, 1024, 512, 256, 128):
        if n % cols == 0:
            return n // cols, cols
    # Fallback: keep the original trailing dim (a block spanning a full dim is
    # always legal), fold everything else into rows.
    if x.ndim >= 2:
        return math.prod(x.shape[:-1]), x.shape[-1]
    return 1, n


def _identity_copy_2d(x2d):
    rows, cols = x2d.shape
    q = _sublane_quantum(x2d.dtype)
    itemsize = jnp.dtype(x2d.dtype).itemsize

    # Rows per block targeting ~2 MiB, rounded down to the sublane quantum,
    # clamped so a single block never (needlessly) exceeds the array.
    tile_rows = max(q, (_TARGET_BLOCK_BYTES // (cols * itemsize)) // q * q)
    tile_rows = min(tile_rows, ((rows + q - 1) // q) * q)

    grid = (pl.cdiv(rows, tile_rows),)  # partial last block is masked by Pallas

    return pl.pallas_call(
        _copy_kernel,
        out_shape=jax.ShapeDtypeStruct((rows, cols), x2d.dtype),
        grid=grid,
        in_specs=[pl.BlockSpec((tile_rows, cols), lambda i: (i, 0))],
        out_specs=pl.BlockSpec((tile_rows, cols), lambda i: (i, 0)),
        input_output_aliases={0: 0},
        compiler_params=pltpu.CompilerParams(
            dimension_semantics=("parallel",),
            vmem_limit_bytes=_VMEM_LIMIT_BYTES,
        ),
    )(x2d)


def identity_copy_pallas(x):
    """Explicit Pallas pass-through (f = identity) with no wrapper-side copies."""
    if x.size == 0:
        return x
    orig_shape = x.shape
    rows, cols = _choose_2d_view(x)
    x2d = jnp.reshape(x, (rows, cols))     # metadata-only for contiguous inputs
    y2d = _identity_copy_2d(x2d)
    return jnp.reshape(y2d, orig_shape)


class IdentityPallas:
    """JAX/Pallas analogue of the PyTorch `Identity(f)` module (forward = f(x)).

    * f is None  -> identity. Fast path returns x directly (zero HBM passes);
      set use_kernel=True to route through the explicit Pallas copy kernel.
    * f callable -> applied as plain JAX.
    """
    # TODO(synk): arbitrary user-supplied callables `f` have no generic Pallas
    # translation; only f = identity has an in-kernel path.

    def __init__(self, f=None, use_kernel=False):
        self.f = f
        self.use_kernel = use_kernel

    def __call__(self, x):
        if self.f is not None:
            return self.f(x)
        if not self.use_kernel:
            return x  # optimal identity: no kernel launch, no HBM traffic
        return identity_copy_pallas(x)


if __name__ == "__main__":
    key = jax.random.PRNGKey(0)
    # Small NCHW input, consistent with a typical conv-style tensor.
    x = jax.random.normal(key, (2, 4, 16, 16), dtype=jnp.float32)

    # Fast path (recommended for f = identity): returns x untouched.
    fast = IdentityPallas()
    y_fast = jax.block_until_ready(fast(x))

    # Explicit Pallas pass-through kernel path (validates TPU lowering).
    model = IdentityPallas(use_kernel=True)
    y = jax.block_until_ready(model(x))

    assert y.shape == x.shape
    assert y.dtype == x.dtype
    assert bool(jnp.all(y == x))
    assert bool(jnp.all(y_fast == x))
    print("KERNEL_OK")
</pallas_src>

<mosaic_0001>
module attributes {stable_mosaic.version = 11 : i64} {
  func.func @_copy_kernel(%arg0: i32, %arg1: memref<8x2048xf32, #tpu.memory_space<vmem>>, %arg2: memref<8x2048xf32, #tpu.memory_space<vmem>>) attributes {dimension_semantics = [#tpu.dimension_semantics<parallel>], iteration_bounds = array<i64: 1>, scalar_prefetch = 0 : i64, scratch_operands = 0 : i64, tpu.core_type = #tpu.core_type<tc>, window_params = [{transform_indices = @transform_0, window_bounds = array<i64: 8, 2048>}, {transform_indices = @transform_1, window_bounds = array<i64: 8, 2048>}]} {
    %c0 = arith.constant 0 : index
    %c0_0 = arith.constant 0 : index
    %0 = vector.load %arg1[%c0, %c0_0] : memref<8x2048xf32, #tpu.memory_space<vmem>>, vector<8x2048xf32>
    %c0_1 = arith.constant 0 : index
    %c0_2 = arith.constant 0 : index
    %1 = vector.load %arg2[%c0_1, %c0_2] : memref<8x2048xf32, #tpu.memory_space<vmem>>, vector<8x2048xf32>
    tpu.vector_store %arg2[%c0_1, %c0_2], %0 {strides = array<i32>} : memref<8x2048xf32, #tpu.memory_space<vmem>>, vector<8x2048xf32>,
    return
  }
  func.func @transform_0(%arg0: i32) -> (i32, i32) {
    %c0_i32 = arith.constant 0 : i32
    %c0_i32_0 = arith.constant 0 : i32
    return %arg0, %c0_i32 : i32, i32
  }
  func.func @transform_1(%arg0: i32) -> (i32, i32) {
    %c0_i32 = arith.constant 0 : i32
    %c0_i32_0 = arith.constant 0 : i32
    return %arg0, %c0_i32 : i32, i32
  }
}

</mosaic_0001>

<llo_original>
// kernel: tpu_custom_call.1
$region0: #{tpu_custom_call.1}
  #allocation0 [shape = 'u32[]', space=smem, size = 0x4, offset = 0x4, fixed_abs, tag = 'smem constant byte address 0x4 - core index']
  #allocation1 [shape = 'u32[144,128]{1,0:T(1,128)}', space=vmem, size = 0x12000, scoped, tag = 'internal scratch']
  %s0 = inlined_call_operand.hbm [shape: f32[1,2048], index: 0, kind: input, shape index: {}, may-alias: {0,1}]
  %s1 = inlined_call_operand.hbm [shape: f32[1,2048], index: 1, kind: output, shape index: {}, may-alias: {0,1}]
  %s2 = sld [smem:[#allocation0]]
  $region18: #{tpu_custom_call.1} parent=0
    _
  %s4 = ssub.s32 1, %s2
  %s5 = scalar_select 0, %s4, %s2
  $region1: #{tpu_custom_call.1} parent=0
    #allocation2 [shape = 'u8[65536]{0}', space=vmem, size = 0x10000, scoped, tag = 'input window, operand 0, single buffered']
    #allocation3 [shape = 's32[1]{0}', space=sflag, size = 0x4, scoped, tag = 'scoped memory for tpu_custom_call.1']
    #allocation4 [shape = 's32[1]{0}', space=sflag, size = 0x4, scoped, tag = 'scoped memory for tpu_custom_call.1']
    #allocation5 [shape = 'u8[65536]{0}', space=vmem, size = 0x10000, scoped, tag = 'output window, operand 0, single buffered']
    %6 = vsyncpa [#allocation3], 0
    %7 = vsyncpa [#allocation4], 0
    // Predicated region
    $region2: #{tpu_custom_call.1} parent=1 // pred_check
      _
    $region3: #{tpu_custom_call.1} parent=1 // pred_check_branch
      %9 = sbr.rel (0) target = $region5
    $region4: #{tpu_custom_call.1} parent=1 // pred_region
      %s11 = ssub.s32 2048, 256
      %12 = vsyncadd [#allocation3], %s11
      %s13 = sshll.u32 [#allocation2], 4
      %s14 = int_to_ptr.vmem [resolvable:$true] %s13
      %19 = dma.hbm_to_vmem [thread:$0]  %s0, 256, %s14, [#allocation3], 256, 256, 16
    $region5: #{tpu_custom_call.1} parent=1 // pred_fallthru
      _
    // Predicated region
    $region6: #{tpu_custom_call.1} parent=1 // pred_check
      _
    $region7: #{tpu_custom_call.1} parent=1 // pred_check_branch
      %21 = sbr.rel (0) target = $region9
    $region8: #{tpu_custom_call.1} parent=1 // pred_region
      %22 = dma.done [#allocation3], 2048
    $region9: #{tpu_custom_call.1} parent=1 // pred_fallthru
      _
    %v23 = vld [vmem:[#allocation2] sm:$0xff]
    %v24 = vld [vmem:[#allocation2 + $0x8] sm:$0xff]
    %v25 = vld [vmem:[#allocation2 + $0x10] sm:$0xff]
    %v26 = vld [vmem:[#allocation2 + $0x18] sm:$0xff]
    %v27 = vld [vmem:[#allocation2 + $0x20] sm:$0xff]
    %v28 = vld [vmem:[#allocation2 + $0x28] sm:$0xff]
    %v29 = vld [vmem:[#allocation2 + $0x30] sm:$0xff]
    %v30 = vld [vmem:[#allocation2 + $0x38] sm:$0xff]
    %v31 = vld [vmem:[#allocation2 + $0x40] sm:$0xff]
    %v32 = vld [vmem:[#allocation2 + $0x48] sm:$0xff]
    %v33 = vld [vmem:[#allocation2 + $0x50] sm:$0xff]
    %v34 = vld [vmem:[#allocation2 + $0x58] sm:$0xff]
    %v35 = vld [vmem:[#allocation2 + $0x60] sm:$0xff]
    %v36 = vld [vmem:[#allocation2 + $0x68] sm:$0xff]
    %v37 = vld [vmem:[#allocation2 + $0x70] sm:$0xff]
    %v38 = vld [vmem:[#allocation2 + $0x78] sm:$0xff]
    %39 = vst [vmem:[#allocation5] sm:$0xff] %v23
    %40 = vst [vmem:[#allocation5 + $0x8] sm:$0xff] %v24
    %41 = vst [vmem:[#allocation5 + $0x10] sm:$0xff] %v25
    %42 = vst [vmem:[#allocation5 + $0x18] sm:$0xff] %v26
    %43 = vst [vmem:[#allocation5 + $0x20] sm:$0xff] %v27
    %44 = vst [vmem:[#allocation5 + $0x28] sm:$0xff] %v28
    %45 = vst [vmem:[#allocation5 + $0x30] sm:$0xff] %v29
    %46 = vst [vmem:[#allocation5 + $0x38] sm:$0xff] %v30
    %47 = vst [vmem:[#allocation5 + $0x40] sm:$0xff] %v31
    %48 = vst [vmem:[#allocation5 + $0x48] sm:$0xff] %v32
    %49 = vst [vmem:[#allocation5 + $0x50] sm:$0xff] %v33
    %50 = vst [vmem:[#allocation5 + $0x58] sm:$0xff] %v34
    %51 = vst [vmem:[#allocation5 + $0x60] sm:$0xff] %v35
    %52 = vst [vmem:[#allocation5 + $0x68] sm:$0xff] %v36
    %53 = vst [vmem:[#allocation5 + $0x70] sm:$0xff] %v37
    %54 = vst [vmem:[#allocation5 + $0x78] sm:$0xff] %v38
    // Predicated region
    $region10: #{tpu_custom_call.1} parent=1 // pred_check
      _
    $region11: #{tpu_custom_call.1} parent=1 // pred_check_branch
      %56 = sbr.rel (0) target = $region13
    $region12: #{tpu_custom_call.1} parent=1 // pred_region
      %s58 = ssub.s32 2048, 256
      %59 = vsyncadd [#allocation4], %s58
      %s60 = sshll.u32 [#allocation5], 4
      %s61 = int_to_ptr.vmem [resolvable:$true] %s60
      %66 = dma.vmem_to_hbm [thread:$0]  %s61, 256, %s1, [#allocation4], 256, 256, 16
    $region13: #{tpu_custom_call.1} parent=1 // pred_fallthru
      _
    // Predicated region
    $region14: #{tpu_custom_call.1} parent=1 // pred_check
      _
    $region15: #{tpu_custom_call.1} parent=1 // pred_check_branch
      %68 = sbr.rel (0) target = $region17
    $region16: #{tpu_custom_call.1} parent=1 // pred_region
      %69 = dma.done [#allocation4], 2048
    $region17: #{tpu_custom_call.1} parent=1 // pred_fallthru
      _
    %70 = vsyncpa [#allocation3], 1
    %71 = vsyncpa [#allocation4], 1

</llo_original>
